<compile_context>
chip_gen: v7x
topology: tpu7x:2x2x1
jax: 0.10.0
libtpu: 0.0.40
codegen_flags: <defaults>
</compile_context>

<pallas_src>
import functools
import math

import jax
import jax.numpy as jnp
from jax.experimental import pallas as pl
from jax.experimental.pallas import tpu as pltpu


def _patch_embed_kernel(patches_ref, w_ref, consts_ref, pos_ref, o_ref,
                        *, batch: int, n_patches: int):
    # consts rows: 0 = conv bias, 1 = class token, 2 = alpha, 3 = beta
    bias = consts_ref[0:1, :]      # (1, E)
    cls = consts_ref[1:2, :]       # (1, E)
    alpha = consts_ref[2:3, :]     # (1, E)
    beta = consts_ref[3:4, :]      # (1, E)

    # Single fused MXU matmul for all B*Np patches, f32 accumulation.
    emb = jnp.dot(patches_ref[...], w_ref[...],
                  preferred_element_type=jnp.float32) + bias   # (B*Np, E)

    pos = pos_ref[...]             # (Nt, E)
    pos_cls = pos[0:1, :]          # (1, E)
    pos_body = pos[1:, :]          # (Np, E)

    gate = lambda t: alpha * jnp.tanh(t) + beta

    # Class token row is identical for every batch element: gate it once.
    cls_tok = gate(cls + pos_cls).astype(o_ref.dtype)          # (1, E)

    for b in range(batch):         # static unroll over the tiny batch
        body = emb[b * n_patches:(b + 1) * n_patches, :] + pos_body
        o_ref[b, 0:1, :] = cls_tok
        o_ref[b, 1:, :] = gate(body).astype(o_ref.dtype)


def patch_embedder(x, params, *, patch_size: int):
    """x: (B, C, H, W) float32.  Returns (B, Np+1, E) tokens (TanhGate'd)."""
    B, C, H, W = x.shape
    P = patch_size
    Hp, Wp = H // P, W // P
    Np = Hp * Wp
    Nt = Np + 1
    E = params["consts"].shape[1]
    K = C * P * P

    # im2col (layout plumbing only): (B,C,H,W) -> (B*Np, C*P*P), patch order
    # row-major over (Hp, Wp), feature order (c, pi, pj) to match Conv2d weight.
    # TODO(synk): patch extraction (space-to-depth transpose) stays in the JAX
    # wrapper; there is no lane-aligned in-kernel equivalent at C=4, P=4.
    patches = (x.reshape(B, C, Hp, P, Wp, P)
                .transpose(0, 2, 4, 1, 3, 5)
                .reshape(B * Np, K))

    kernel = functools.partial(_patch_embed_kernel, batch=B, n_patches=Np)

    return pl.pallas_call(
        kernel,
        out_shape=jax.ShapeDtypeStruct((B, Nt, E), x.dtype),
        grid_spec=pltpu.PrefetchScalarGridSpec(
            num_scalar_prefetch=0,
            grid=(1,),  # fully collapsed: everything fits in VMEM with margin
            in_specs=[
                pl.BlockSpec((B * Np, K), lambda i: (0, 0)),   # patches
                pl.BlockSpec((K, E), lambda i: (0, 0)),        # projection weight
                pl.BlockSpec((4, E), lambda i: (0, 0)),        # packed consts
                pl.BlockSpec((Nt, E), lambda i: (0, 0)),       # pos embeddings
            ],
            out_specs=pl.BlockSpec((B, Nt, E), lambda i: (0, 0, 0)),
        ),
        compiler_params=pltpu.CompilerParams(
            dimension_semantics=("arbitrary",)),
    )(patches, params["w_t"], params["consts"], params["pos_2d"])


def reference_patch_embedder(x, params, *, patch_size: int):
    """Pure-JAX reference mirroring nn.Conv2d + concat + pos-embed + TanhGate."""
    P = patch_size
    emb = jax.lax.conv_general_dilated(
        x, params["conv_w"], window_strides=(P, P), padding="VALID",
        dimension_numbers=("NCHW", "OIHW", "NCHW"))
    emb = emb + params["conv_b"][None, :, None, None]
    B, E, Hp, Wp = emb.shape
    flat = emb.reshape(B, E, Hp * Wp).transpose(0, 2, 1)          # (B, Np, E)
    cls = jnp.broadcast_to(params["class_token"], (B, 1, E))
    toks = jnp.concatenate([cls, flat], axis=1) + params["pos_emb"]
    return params["alpha"] * jnp.tanh(toks) + params["beta"]


def init_params(key, *, num_channels: int, image_size: int,
                patch_size: int, embed_dim: int):
    """Deterministic params matching the PyTorch module's shapes, plus the
    kernel-friendly pre-packed forms (weight reshape/transpose + packed consts
    are one-time parameter transforms, not per-call work)."""
    C, P, E = num_channels, patch_size, embed_dim
    K = C * P * P
    Np = (image_size // P) ** 2
    Nt = Np + 1
    ks = jax.random.split(key, 6)
    scale = 1.0 / math.sqrt(K)
    conv_w = jax.random.uniform(ks[0], (E, C, P, P), jnp.float32, -scale, scale)
    conv_b = jax.random.uniform(ks[1], (E,), jnp.float32, -scale, scale)
    class_token = jax.random.normal(ks[2], (1, 1, E), jnp.float32)
    pos_emb = jax.random.normal(ks[3], (1, Nt, E), jnp.float32)
    # TanhGate params (init is ones/zeros in PyTorch; perturb for a stronger test).
    alpha = 1.0 + 0.1 * jax.random.normal(ks[4], (E,), jnp.float32)
    beta = 0.1 * jax.random.normal(ks[5], (E,), jnp.float32)

    return {
        # raw (reference) params
        "conv_w": conv_w, "conv_b": conv_b,
        "class_token": class_token, "pos_emb": pos_emb,
        "alpha": alpha, "beta": beta,
        # kernel-ready params
        "w_t": conv_w.reshape(E, K).T,                               # (K, E)
        "consts": jnp.stack(
            [conv_b, class_token.reshape(E), alpha, beta], axis=0),  # (4, E)
        "pos_2d": pos_emb.reshape(Nt, E),                            # (Nt, E)
    }


if __name__ == "__main__":
    # image_size=16, patch_size=4, channels=4, embedding_dimension=32
    B, C, H, P, E = 2, 4, 16, 4, 32
    key = jax.random.PRNGKey(0)
    kx, kp = jax.random.split(key)
    x = jax.random.normal(kx, (B, C, H, H), jnp.float32)
    params = init_params(kp, num_channels=C, image_size=H,
                         patch_size=P, embed_dim=E)

    y = patch_embedder(x, params, patch_size=P)
    y = jax.block_until_ready(y)

    y_ref = reference_patch_embedder(x, params, patch_size=P)
    Nt = (H // P) ** 2 + 1
    assert y.shape == (B, Nt, E)
    assert jnp.allclose(y, y_ref, atol=1e-5, rtol=1e-5), "mismatch vs JAX reference"

    print("KERNEL_OK")
</pallas_src>

<mosaic_0001>
module attributes {stable_mosaic.version = 11 : i64} {
  func.func @_patch_embed_kernel(%arg0: i32, %arg1: memref<32x64xf32, #tpu.memory_space<vmem>>, %arg2: memref<64x32xf32, #tpu.memory_space<vmem>>, %arg3: memref<4x32xf32, #tpu.memory_space<vmem>>, %arg4: memref<17x32xf32, #tpu.memory_space<vmem>>, %arg5: memref<2x17x32xf32, #tpu.memory_space<vmem>>) attributes {dimension_semantics = [#tpu.dimension_semantics<arbitrary>], iteration_bounds = array<i64: 1>, scalar_prefetch = 0 : i64, scratch_operands = 0 : i64, tpu.core_type = #tpu.core_type<tc>, window_params = [{pipeline_mode = #tpu.pipeline_mode<synchronous>, transform_indices = @transform_0, window_bounds = array<i64: 32, 64>}, {pipeline_mode = #tpu.pipeline_mode<synchronous>, transform_indices = @transform_1, window_bounds = array<i64: 64, 32>}, {pipeline_mode = #tpu.pipeline_mode<synchronous>, transform_indices = @transform_2, window_bounds = array<i64: 4, 32>}, {pipeline_mode = #tpu.pipeline_mode<synchronous>, transform_indices = @transform_3, window_bounds = array<i64: 17, 32>}, {pipeline_mode = #tpu.pipeline_mode<synchronous>, transform_indices = @transform_4, window_bounds = array<i64: 2, 17, 32>}]} {
    %c0 = arith.constant 0 : index
    %c0_0 = arith.constant 0 : index
    %0 = vector.load %arg3[%c0, %c0_0] : memref<4x32xf32, #tpu.memory_space<vmem>>, vector<1x32xf32>
    %c1 = arith.constant 1 : index
    %c0_1 = arith.constant 0 : index
    %1 = vector.load %arg3[%c1, %c0_1] : memref<4x32xf32, #tpu.memory_space<vmem>>, vector<1x32xf32>
    %c2 = arith.constant 2 : index
    %c0_2 = arith.constant 0 : index
    %2 = vector.load %arg3[%c2, %c0_2] : memref<4x32xf32, #tpu.memory_space<vmem>>, vector<1x32xf32>
    %c3 = arith.constant 3 : index
    %c0_3 = arith.constant 0 : index
    %3 = vector.load %arg3[%c3, %c0_3] : memref<4x32xf32, #tpu.memory_space<vmem>>, vector<1x32xf32>
    %c0_4 = arith.constant 0 : index
    %c0_5 = arith.constant 0 : index
    %4 = vector.load %arg1[%c0_4, %c0_5] : memref<32x64xf32, #tpu.memory_space<vmem>>, vector<32x64xf32>
    %c0_6 = arith.constant 0 : index
    %c0_7 = arith.constant 0 : index
    %5 = vector.load %arg2[%c0_6, %c0_7] : memref<64x32xf32, #tpu.memory_space<vmem>>, vector<64x32xf32>
    %cst = arith.constant dense<0.000000e+00> : vector<32x32xf32>
    %6 = tpu.matmul %4, %5, %cst {dimension_numbers = #tpu.dot_dimension_numbers<[1], [0], [0], [1], [0, 0, 1, 1], [], []>} : vector<32x64xf32>, vector<64x32xf32>, vector<32x32xf32> -> vector<32x32xf32>
    %7 = vector.broadcast %0 : vector<1x32xf32> to vector<32x32xf32>
    %8 = arith.addf %6, %7 : vector<32x32xf32>
    %c0_8 = arith.constant 0 : index
    %c0_9 = arith.constant 0 : index
    %9 = vector.load %arg4[%c0_8, %c0_9] : memref<17x32xf32, #tpu.memory_space<vmem>>, vector<17x32xf32>
    %10 = vector.extract_strided_slice %9 {offsets = [0, 0], sizes = [1, 32], strides = [1, 1]} : vector<17x32xf32> to vector<1x32xf32>
    %11 = vector.extract_strided_slice %9 {offsets = [1, 0], sizes = [16, 32], strides = [1, 1]} : vector<17x32xf32> to vector<16x32xf32>
    %12 = arith.addf %1, %10 : vector<1x32xf32>
    %13 = math.tanh %12 : vector<1x32xf32>
    %14 = arith.mulf %2, %13 : vector<1x32xf32>
    %15 = arith.addf %14, %3 : vector<1x32xf32>
    %16 = vector.extract_strided_slice %8 {offsets = [0, 0], sizes = [16, 32], strides = [1, 1]} : vector<32x32xf32> to vector<16x32xf32>
    %17 = arith.addf %16, %11 : vector<16x32xf32>
    %c0_10 = arith.constant 0 : index
    %c0_11 = arith.constant 0 : index
    %c0_12 = arith.constant 0 : index
    %18 = vector.load %arg5[%c0_10, %c0_11, %c0_12] : memref<2x17x32xf32, #tpu.memory_space<vmem>>, vector<1x1x32xf32>
    %19 = vector.shape_cast %18 : vector<1x1x32xf32> to vector<1x32xf32>
    %20 = vector.shape_cast %15 : vector<1x32xf32> to vector<1x1x32xf32>
    tpu.vector_store %arg5[%c0_10, %c0_11, %c0_12], %20 {strides = array<i32>} : memref<2x17x32xf32, #tpu.memory_space<vmem>>, vector<1x1x32xf32>,
    %21 = math.tanh %17 : vector<16x32xf32>
    %22 = vector.broadcast %2 : vector<1x32xf32> to vector<16x32xf32>
    %23 = arith.mulf %22, %21 : vector<16x32xf32>
    %24 = vector.broadcast %3 : vector<1x32xf32> to vector<16x32xf32>
    %25 = arith.addf %23, %24 : vector<16x32xf32>
    %c0_13 = arith.constant 0 : index
    %c1_14 = arith.constant 1 : index
    %c0_15 = arith.constant 0 : index
    %26 = vector.load %arg5[%c0_13, %c1_14, %c0_15] : memref<2x17x32xf32, #tpu.memory_space<vmem>>, vector<1x16x32xf32>
    %27 = vector.shape_cast %26 : vector<1x16x32xf32> to vector<16x32xf32>
    %28 = vector.shape_cast %25 : vector<16x32xf32> to vector<1x16x32xf32>
    tpu.vector_store %arg5[%c0_13, %c1_14, %c0_15], %28 {strides = array<i32>} : memref<2x17x32xf32, #tpu.memory_space<vmem>>, vector<1x16x32xf32>,
    %29 = vector.extract_strided_slice %8 {offsets = [16, 0], sizes = [16, 32], strides = [1, 1]} : vector<32x32xf32> to vector<16x32xf32>
    %30 = arith.addf %29, %11 : vector<16x32xf32>
    %c1_16 = arith.constant 1 : index
    %c0_17 = arith.constant 0 : index
    %c0_18 = arith.constant 0 : index
    %31 = vector.load %arg5[%c1_16, %c0_17, %c0_18] : memref<2x17x32xf32, #tpu.memory_space<vmem>>, vector<1x1x32xf32>
    %32 = vector.shape_cast %31 : vector<1x1x32xf32> to vector<1x32xf32>
    %33 = vector.shape_cast %15 : vector<1x32xf32> to vector<1x1x32xf32>
    tpu.vector_store %arg5[%c1_16, %c0_17, %c0_18], %33 {strides = array<i32>} : memref<2x17x32xf32, #tpu.memory_space<vmem>>, vector<1x1x32xf32>,
    %34 = math.tanh %30 : vector<16x32xf32>
    %35 = vector.broadcast %2 : vector<1x32xf32> to vector<16x32xf32>
    %36 = arith.mulf %35, %34 : vector<16x32xf32>
    %37 = vector.broadcast %3 : vector<1x32xf32> to vector<16x32xf32>
    %38 = arith.addf %36, %37 : vector<16x32xf32>
    %c1_19 = arith.constant 1 : index
    %c1_20 = arith.constant 1 : index
    %c0_21 = arith.constant 0 : index
    %39 = vector.load %arg5[%c1_19, %c1_20, %c0_21] : memref<2x17x32xf32, #tpu.memory_space<vmem>>, vector<1x16x32xf32>
    %40 = vector.shape_cast %39 : vector<1x16x32xf32> to vector<16x32xf32>
    %41 = vector.shape_cast %38 : vector<16x32xf32> to vector<1x16x32xf32>
    tpu.vector_store %arg5[%c1_19, %c1_20, %c0_21], %41 {strides = array<i32>} : memref<2x17x32xf32, #tpu.memory_space<vmem>>, vector<1x16x32xf32>,
    return
  }
  func.func @transform_0(%arg0: i32) -> (i32, i32) {
    %c0_i32 = arith.constant 0 : i32
    %c0_i32_0 = arith.constant 0 : i32
    %c0_i32_1 = arith.constant 0 : i32
    return %c0_i32, %c0_i32_0 : i32, i32
  }
  func.func @transform_1(%arg0: i32) -> (i32, i32) {
    %c0_i32 = arith.constant 0 : i32
    %c0_i32_0 = arith.constant 0 : i32
    %c0_i32_1 = arith.constant 0 : i32
    return %c0_i32, %c0_i32_0 : i32, i32
  }
  func.func @transform_2(%arg0: i32) -> (i32, i32) {
    %c0_i32 = arith.constant 0 : i32
    %c0_i32_0 = arith.constant 0 : i32
    %c0_i32_1 = arith.constant 0 : i32
    return %c0_i32, %c0_i32_0 : i32, i32
  }
  func.func @transform_3(%arg0: i32) -> (i32, i32) {
    %c0_i32 = arith.constant 0 : i32
    %c0_i32_0 = arith.constant 0 : i32
    %c0_i32_1 = arith.constant 0 : i32
    return %c0_i32, %c0_i32_0 : i32, i32
  }
  func.func @transform_4(%arg0: i32) -> (i32, i32, i32) {
    %c0_i32 = arith.constant 0 : i32
    %c0_i32_0 = arith.constant 0 : i32
    %c0_i32_1 = arith.constant 0 : i32
    %c0_i32_2 = arith.constant 0 : i32
    return %c0_i32, %c0_i32_0, %c0_i32_1 : i32, i32, i32
  }
}

</mosaic_0001>

<llo_original>
// kernel: tpu_custom_call.1
$region0: #{tpu_custom_call.1}
  #allocation0 [shape = 'u32[]', space=smem, size = 0x4, offset = 0x4, fixed_abs, tag = 'smem constant byte address 0x4 - core index']
  #allocation1 [shape = 'u32[144,128]{1,0:T(1,128)}', space=vmem, size = 0x12000, scoped, tag = 'internal scratch']
  %s0 = inlined_call_operand.vmem [shape: f32[32,64], index: 0, kind: input, shape index: {}]
  %s1 = inlined_call_operand.vmem [shape: f32[64,32], index: 1, kind: input, shape index: {}]
  %s2 = inlined_call_operand.vmem [shape: f32[4,32], index: 2, kind: input, shape index: {}]
  %s3 = inlined_call_operand.vmem [shape: f32[17,32], index: 3, kind: input, shape index: {}]
  %s4 = inlined_call_operand.vmem [shape: f32[2,17,32], index: 4, kind: output, shape index: {}]
  %s5 = sld [smem:[#allocation0]]
  $region26: #{tpu_custom_call.1} parent=0
    _
  %s7 = ssub.s32 1, %s5
  %s8 = scalar_select 0, %s7, %s5
  // Predicated region
  $region2: #{tpu_custom_call.1} parent=0 // pred_check
    _
  $region3: #{tpu_custom_call.1} parent=0 // pred_check_branch
    %10 = sbr.rel (0) target = $region5
  $region4: #{tpu_custom_call.1} parent=0 // pred_region
    _
  $region5: #{tpu_custom_call.1} parent=0 // pred_fallthru
    _
  // Predicated region
  $region6: #{tpu_custom_call.1} parent=0 // pred_check
    _
  $region7: #{tpu_custom_call.1} parent=0 // pred_check_branch
    %12 = sbr.rel (0) target = $region9
  $region8: #{tpu_custom_call.1} parent=0 // pred_region
    _
  $region9: #{tpu_custom_call.1} parent=0 // pred_fallthru
    _
  // Predicated region
  $region10: #{tpu_custom_call.1} parent=0 // pred_check
    _
  $region11: #{tpu_custom_call.1} parent=0 // pred_check_branch
    %14 = sbr.rel (0) target = $region13
  $region12: #{tpu_custom_call.1} parent=0 // pred_region
    _
  $region13: #{tpu_custom_call.1} parent=0 // pred_fallthru
    _
  // Predicated region
  $region14: #{tpu_custom_call.1} parent=0 // pred_check
    _
  $region15: #{tpu_custom_call.1} parent=0 // pred_check_branch
    %16 = sbr.rel (0) target = $region17
  $region16: #{tpu_custom_call.1} parent=0 // pred_region
    _
  $region17: #{tpu_custom_call.1} parent=0 // pred_fallthru
    _
  %v17 = vld [vmem:[%s2] sm:$0x1]
  %v18 = vld [vmem:[%s2 + $0x1] sm:$0x1]
  %v19 = vld [vmem:[%s2 + $0x2] sm:$0x1]
  %v20 = vld [vmem:[%s2 + $0x3] sm:$0x1]
  %v21 = vld [vmem:[%s0] sm:$0xff]
  %v22 = vld [vmem:[%s0 + $0x8] sm:$0xff]
  %v23 = vld [vmem:[%s0 + $0x10] sm:$0xff]
  %v24 = vld [vmem:[%s0 + $0x18] sm:$0xff]
  %v25 = vld [vmem:[%s1] sm:$0xff]
  %v26 = vld [vmem:[%s1 + $0x8] sm:$0xff]
  %v27 = vld [vmem:[%s1 + $0x10] sm:$0xff]
  %v28 = vld [vmem:[%s1 + $0x18] sm:$0xff]
  %v29 = vld [vmem:[%s1 + $0x20] sm:$0xff]
  %v30 = vld [vmem:[%s1 + $0x28] sm:$0xff]
  %v31 = vld [vmem:[%s1 + $0x30] sm:$0xff]
  %v32 = vld [vmem:[%s1 + $0x38] sm:$0xff]
  %v33 = vlaneseq
  %v34 = vshrl.u32 %v33, 7
  %v35 = vsub.s32 0, %v34
  %v36 = vrot.slane %v17, %v35
  %vm37 = vcmask 523264
  %v39 = vsel %vm37, %v21, 0
  %v42 = vsel %vm37, %v22, 0
  %v45 = vsel %vm37, %v23, 0
  %v48 = vsel %vm37, %v24, 0
  %50 = vmatprep.subr.mxu0 0.0
  %51 = vmatpush1.msra.mxu0 %v25
  %52 = vmatprep.subr.mxu0 0.0
  %53 = vmatpush1.msra.mxu0 %v26
  %54 = vmatprep.subr.mxu0 0.0
  %55 = vmatpush1.msra.mxu0 %v27
  %56 = vmatprep.subr.mxu0 0.0
  %57 = vmatpush1.msra.mxu0 %v28
  %58 = vmatprep.subr.mxu0 0.0
  %59 = vmatpush1.msra.mxu0 %v29
  %60 = vmatprep.subr.mxu0 0.0
  %61 = vmatpush1.msra.mxu0 %v30
  %62 = vmatprep.subr.mxu0 0.0
  %63 = vmatpush1.msra.mxu0 %v31
  %64 = vmatprep.subr.mxu0 0.0
  %65 = vmatpush1.msra.mxu0 %v32
  %66 = vmatprep.subr.mxu0 0.0
  %67 = vmatpush1.msra.mxu0 0.0
  %68 = vmatprep.subr.mxu0 0.0
  %69 = vmatpush1.msra.mxu0 0.0
  %70 = vmatprep.subr.mxu0 0.0
  %71 = vmatpush1.msra.mxu0 0.0
  %72 = vmatprep.subr.mxu0 0.0
  %73 = vmatpush1.msra.mxu0 0.0
  %74 = vmatprep.subr.mxu0 0.0
  %75 = vmatpush1.msra.mxu0 0.0
  %76 = vmatprep.subr.mxu0 0.0
  %77 = vmatpush1.msra.mxu0 0.0
  %78 = vmatprep.subr.mxu0 0.0
  %79 = vmatpush1.msra.mxu0 0.0
  %80 = vmatprep.subr.mxu0 0.0
  %81 = vmatpush1.msra.mxu0 0.0
  %82 = vmatprep.subr.mxu0 0.0
  %83 = vmatpush1.msra.mxu0 0.0
  %84 = vmatprep.subr.mxu0 0.0
  %85 = vmatpush1.msra.mxu0 0.0
  %86 = vmatprep.subr.mxu0 0.0
  %87 = vmatpush1.msra.mxu0 0.0
  %88 = vmatprep.subr.mxu0 0.0
  %89 = vmatpush1.msra.mxu0 0.0
  %90 = vmatprep.subr.mxu0 0.0
  %91 = vmatpush1.msra.mxu0 0.0
  %92 = vmatprep.subr.mxu0 0.0
  %93 = vmatpush1.msra.mxu0 0.0
  %94 = vmatprep.subr.mxu0 0.0
  %95 = vmatpush1.msra.mxu0 0.0
  %96 = vmatprep.subr.mxu0 0.0
  %97 = vmatpush1.msra.mxu0 0.0
  %98 = vmatprep.subr.mxu0 0.0
  %99 = vmatpush1.msra.mxu0 0.0
  %100 = vmatprep.subr.mxu0 0.0
  %101 = vmatpush1.msra.mxu0 0.0
  %102 = vmatprep.subr.mxu0 0.0
  %103 = vmatpush1.msra.mxu0 0.0
  %104 = vmatprep.subr.mxu0 0.0
  %105 = vmatpush1.msra.mxu0 0.0
  %106 = vmatprep.subr.mxu0 0.0
  %107 = vmatpush1.msra.mxu0 0.0
  %108 = vmatprep.subr.mxu0 0.0
  %109 = vmatpush1.msra.mxu0 0.0
  %110 = vmatprep.subr.mxu0 0.0
  %111 = vmatpush1.msra.mxu0 0.0
  %112 = vmatprep.subr.mxu0 0.0
  %113 = vmatpush1.msra.mxu0 0.0
  %114 = vmatprep.mubr.f32.mxu0 0.0
  %115 = vmatmul.mubr.f32.gmra.mrb[0].mxu0 %v39
  %v116 = vpop.f32.mrb[0].mxu0
  %v117 = vadd.f32 %v36, %v116
  %v118 = vpop.f32.mrb[0].mxu0
  %119 = vmatprep.mubr.f32.mxu0 0.0
  %120 = vmatmul.mubr.f32.gmra.mrb[0].mxu0 %v42
  %v121 = vpop.f32.mrb[0].mxu0
  %v122 = vadd.f32 %v36, %v121
  %v123 = vpop.f32.mrb[0].mxu0
  %124 = vmatprep.mubr.f32.mxu0 0.0
  %125 = vmatmul.mubr.f32.gmra.mrb[0].mxu0 %v45
  %v126 = vpop.f32.mrb[0].mxu0
  %v127 = vadd.f32 %v36, %v126
  %v128 = vpop.f32.mrb[0].mxu0
  %129 = vmatprep.mubr.f32.mxu0 0.0
  %130 = vmatmul.mubr.f32.gmra.mrb[0].mxu0 %v48
  %v131 = vpop.f32.mrb[0].mxu0
  %v132 = vadd.f32 %v36, %v131
  %v133 = vpop.f32.mrb[0].mxu0
  %134 = vdwg.mxu0
  %v135 = vld [vmem:[%s3] sm:$0xff]
  %v136 = vld [vmem:[%s3 + $0x8] sm:$0xff]
  %v137 = vld [vmem:[%s3 + $0x10] sm:$0x1]
  %v138 = vadd.f32 %v18, %v135
  %v139 = vtanh.pop %v138
  %v140 = vmul.f32 %v19, %v139
  %v141 = vadd.f32 %v140, %v20
  %vm145 = vcmask 1046528
  %v146 = vrot.slane %v135, 1
  %v147 = vrot.slane %v136, 1
  %v148 = vsel %vm145, %v146, %v147
  %v149 = vrot.slane %v137, 1
  %v150 = vsel %vm145, %v147, %v149
  %v153 = vadd.f32 %v117, %v148
  %v154 = vadd.f32 %v122, %v150
  %vm155 = vcmask 253952
  %156 = vst.msk [vmem:[%s4] sm:$0x1] %vm155, %v141
  %v157 = vtanh.pop %v153
  %v158 = vtanh.pop %v154
  %v159 = vlaneseq
  %v160 = vshrl.u32 %v159, 7
  %v161 = vsub.s32 0, %v160
  %v162 = vrot.slane %v19, %v161
  %v163 = vmul.f32 %v162, %v157
  %v164 = vmul.f32 %v162, %v158
  %v165 = vlaneseq
  %v166 = vshrl.u32 %v165, 7
  %v167 = vsub.s32 0, %v166
  %v168 = vrot.slane %v20, %v167
  %v169 = vadd.f32 %v163, %v168
  %v170 = vadd.f32 %v164, %v168
  %vm171 = vcmask 261120
  %172 = vst.msk [vmem:[%s4 + $0x1] sm:$0xff] %vm171, %v169
  %173 = vst.msk [vmem:[%s4 + $0x9] sm:$0xff] %vm171, %v170
  %v174 = vadd.f32 %v127, %v148
  %v175 = vadd.f32 %v132, %v150
  %s176 = scalar_lea.vmem %s4, 24
  %177 = vst.msk [vmem:[%s176] sm:$0x1] %vm155, %v141
  %v178 = vtanh.pop %v174
  %v179 = vtanh.pop %v175
  %v180 = vmul.f32 %v162, %v178
  %v181 = vmul.f32 %v162, %v179
  %v182 = vadd.f32 %v180, %v168
  %v183 = vadd.f32 %v181, %v168
  %184 = vst.msk [vmem:[%s176 + $0x1] sm:$0xff] %vm171, %v182
  %185 = vst.msk [vmem:[%s176 + $0x9] sm:$0xff] %vm171, %v183
  // Predicated region
  $region18: #{tpu_custom_call.1} parent=0 // pred_check
    _
  $region19: #{tpu_custom_call.1} parent=0 // pred_check_branch
    %187 = sbr.rel (0) target = $region21
  $region20: #{tpu_custom_call.1} parent=0 // pred_region
    _
  $region21: #{tpu_custom_call.1} parent=0 // pred_fallthru
    _
  // Predicated region
  $region22: #{tpu_custom_call.1} parent=0 // pred_check
    _
  $region23: #{tpu_custom_call.1} parent=0 // pred_check_branch
    %189 = sbr.rel (0) target = $region25
  $region24: #{tpu_custom_call.1} parent=0 // pred_region
    _
  $region25: #{tpu_custom_call.1} parent=0 // pred_fallthru
    _

</llo_original>
